<compile_context>
chip_gen: v7x
topology: tpu7x:2x2x1
jax: 0.10.0
libtpu: 0.0.40
codegen_flags: <defaults>
</compile_context>

<pallas_src>
import jax
import jax.numpy as jnp
from jax.experimental import pallas as pl
from jax.experimental.pallas import tpu as pltpu

# Layer sizes from the module definition (DIMS[0] is the runtime input_shape).
DIMS = [None, 128, 64, 64, 48, 16]


def dnn_kernel(x_ref,
               w1_ref, b1_ref,
               w2_ref, b2_ref,
               w3_ref, b3_ref,
               w4_ref, b4_ref,
               w5_ref, b5_ref,
               o_ref):
    """Fused forward: 4x (Linear + ReLU) + final Linear, all operands resident in VMEM."""
    h = x_ref[...]
    for w_ref, b_ref in ((w1_ref, b1_ref), (w2_ref, b2_ref),
                         (w3_ref, b3_ref), (w4_ref, b4_ref)):
        h = jnp.dot(h.astype(w_ref.dtype), w_ref[...],
                    preferred_element_type=jnp.float32) + b_ref[...]
        h = jnp.maximum(h, 0.0)        # relu; dropout == identity in eval mode
    o_ref[...] = (jnp.dot(h.astype(w5_ref.dtype), w5_ref[...],
                          preferred_element_type=jnp.float32)
                  + b5_ref[...]).astype(o_ref.dtype)


def _round_up(n, m):
    return ((n + m - 1) // m) * m


def _estimate_vmem_bytes(tile, d_in, x_itemsize, params):
    """Rough per-grid-step VMEM footprint (double-buffered x/out tiles + resident
    weights + f32 intermediate activations)."""
    layer_dims = [w.shape[1] for (w, _) in params]
    x_bytes = 2 * tile * d_in * x_itemsize
    out_bytes = 2 * tile * layer_dims[-1] * 4
    w_bytes = 2 * sum(int(w.size) * w.dtype.itemsize + int(b.size) * 4
                      for (w, b) in params)
    act_bytes = tile * sum(layer_dims) * 4
    return int(x_bytes + out_bytes + w_bytes + act_bytes)


def make_params(input_shape, key):
    """Deterministic PyTorch-style (Kaiming-uniform-ish) init. Weights stored as (in, out)."""
    dims = [input_shape] + DIMS[1:]
    params = []
    for li in range(5):
        fan_in, fan_out = dims[li], dims[li + 1]
        key, kw, kb = jax.random.split(key, 3)
        bound = 1.0 / jnp.sqrt(fan_in)
        w = jax.random.uniform(kw, (fan_in, fan_out), jnp.float32, -bound, bound)
        b = jax.random.uniform(kb, (1, fan_out), jnp.float32, -bound, bound)
        params.append((w, b))
    return params


def dnn_forward(x, params, *, batch_tile=1024, compute_dtype=jnp.float32):
    """Run the fused DNN forward.

    batch_tile:    rows per grid step (multiple of 8).  1k-8k is the sweet spot for
                   large batches; small batches are shrunk/padded automatically.
    compute_dtype: dtype for x and weights inside the kernel (f32 default preserves
                   exact semantics; bf16 halves x HBM traffic, accumulation stays f32).
    """
    B, D_in = x.shape
    out_dim = params[-1][0].shape[1]
    x_itemsize = jnp.dtype(compute_dtype).itemsize

    # ---- batch tile selection ------------------------------------------------
    tile = max(8, min(_round_up(batch_tile, 8), _round_up(B, 8)))
    # Ensure >= 2 grid steps when there is enough work (v7x has 2 TensorCores; a
    # 1-step grid leaves one idle).
    if B >= 16 and _round_up(B, tile) // tile < 2:
        tile = _round_up((B + 1) // 2, 8)
    # Keep the footprint comfortably inside every generation's VMEM budget
    # (v7x: 64 MiB physical; v5e scoped default is only 16 MiB).
    while tile > 8 and _estimate_vmem_bytes(tile, D_in, x_itemsize, params) > (40 << 20):
        tile = max(8, _round_up(tile // 2, 8))

    B_pad = _round_up(B, tile)
    vmem_limit = int(min(2 * _estimate_vmem_bytes(tile, D_in, x_itemsize, params)
                         + (16 << 20), 64 << 20))

    # ---- operands ------------------------------------------------------------
    x_in = x.astype(compute_dtype)
    if B_pad != B:
        x_in = jnp.pad(x_in, ((0, B_pad - B), (0, 0)))

    flat_params = []
    in_specs = [pl.BlockSpec((tile, D_in), lambda i: (i, 0))]
    for (w, b) in params:
        flat_params.append(w.astype(compute_dtype))
        flat_params.append(b.astype(jnp.float32))
        # Whole weight / bias resident in VMEM; constant block index => fetched once.
        in_specs.append(pl.BlockSpec(w.shape, lambda i: (0, 0)))
        in_specs.append(pl.BlockSpec(b.shape, lambda i: (0, 0)))

    grid = (B_pad // tile,)

    out = pl.pallas_call(
        dnn_kernel,
        out_shape=jax.ShapeDtypeStruct((B_pad, out_dim), jnp.float32),
        grid_spec=pltpu.PrefetchScalarGridSpec(
            num_scalar_prefetch=0,
            grid=grid,
            in_specs=in_specs,
            out_specs=pl.BlockSpec((tile, out_dim), lambda i: (i, 0)),
        ),
        compiler_params=pltpu.CompilerParams(
            dimension_semantics=("parallel",),
            vmem_limit_bytes=vmem_limit,
        ),
    )(x_in, *flat_params)

    return out[:B] if B_pad != B else out


def dnn_reference(x, params):
    h = x
    for li, (w, b) in enumerate(params):
        h = h @ w + b
        if li < 4:
            h = jnp.maximum(h, 0.0)
    return h


if __name__ == "__main__":
    key = jax.random.PRNGKey(0)
    key, kx, kp = jax.random.split(key, 3)

    batch = 8
    input_shape = 32  # tabular feature count

    x = jax.random.normal(kx, (batch, input_shape), jnp.float32)
    params = make_params(input_shape, kp)

    out = dnn_forward(x, params)
    out = jax.block_until_ready(out)
    ref = dnn_reference(x, params)
    assert out.shape == (batch, 16), out.shape
    assert jnp.allclose(out, ref, atol=1e-4, rtol=1e-4), float(jnp.max(jnp.abs(out - ref)))

    # Also exercise the padded, multi-step-grid path (non-multiple batch, tiny tile).
    kx2 = jax.random.fold_in(kx, 1)
    x2 = jax.random.normal(kx2, (20, input_shape), jnp.float32)
    out2 = jax.block_until_ready(dnn_forward(x2, params, batch_tile=8))
    ref2 = dnn_reference(x2, params)
    assert out2.shape == (20, 16), out2.shape
    assert jnp.allclose(out2, ref2, atol=1e-4, rtol=1e-4), float(jnp.max(jnp.abs(out2 - ref2)))

    print("KERNEL_OK")
</pallas_src>

<mosaic_0001>
module attributes {stable_mosaic.version = 11 : i64} {
  func.func @dnn_kernel(%arg0: i32, %arg1: memref<8x32xf32, #tpu.memory_space<vmem>>, %arg2: memref<32x128xf32, #tpu.memory_space<vmem>>, %arg3: memref<1x128xf32, #tpu.memory_space<vmem>>, %arg4: memref<128x64xf32, #tpu.memory_space<vmem>>, %arg5: memref<1x64xf32, #tpu.memory_space<vmem>>, %arg6: memref<64x64xf32, #tpu.memory_space<vmem>>, %arg7: memref<1x64xf32, #tpu.memory_space<vmem>>, %arg8: memref<64x48xf32, #tpu.memory_space<vmem>>, %arg9: memref<1x48xf32, #tpu.memory_space<vmem>>, %arg10: memref<48x16xf32, #tpu.memory_space<vmem>>, %arg11: memref<1x16xf32, #tpu.memory_space<vmem>>, %arg12: memref<8x16xf32, #tpu.memory_space<vmem>>) attributes {dimension_semantics = [#tpu.dimension_semantics<parallel>], iteration_bounds = array<i64: 1>, scalar_prefetch = 0 : i64, scratch_operands = 0 : i64, tpu.core_type = #tpu.core_type<tc>, window_params = [{transform_indices = @transform_0, window_bounds = array<i64: 8, 32>}, {pipeline_mode = #tpu.pipeline_mode<synchronous>, transform_indices = @transform_1, window_bounds = array<i64: 32, 128>}, {pipeline_mode = #tpu.pipeline_mode<synchronous>, transform_indices = @transform_2, window_bounds = array<i64: 1, 128>}, {pipeline_mode = #tpu.pipeline_mode<synchronous>, transform_indices = @transform_3, window_bounds = array<i64: 128, 64>}, {pipeline_mode = #tpu.pipeline_mode<synchronous>, transform_indices = @transform_4, window_bounds = array<i64: 1, 64>}, {pipeline_mode = #tpu.pipeline_mode<synchronous>, transform_indices = @transform_5, window_bounds = array<i64: 64, 64>}, {pipeline_mode = #tpu.pipeline_mode<synchronous>, transform_indices = @transform_6, window_bounds = array<i64: 1, 64>}, {pipeline_mode = #tpu.pipeline_mode<synchronous>, transform_indices = @transform_7, window_bounds = array<i64: 64, 48>}, {pipeline_mode = #tpu.pipeline_mode<synchronous>, transform_indices = @transform_8, window_bounds = array<i64: 1, 48>}, {pipeline_mode = #tpu.pipeline_mode<synchronous>, transform_indices = @transform_9, window_bounds = array<i64: 48, 16>}, {pipeline_mode = #tpu.pipeline_mode<synchronous>, transform_indices = @transform_10, window_bounds = array<i64: 1, 16>}, {transform_indices = @transform_11, window_bounds = array<i64: 8, 16>}]} {
    %c0 = arith.constant 0 : index
    %c0_0 = arith.constant 0 : index
    %0 = vector.load %arg1[%c0, %c0_0] : memref<8x32xf32, #tpu.memory_space<vmem>>, vector<8x32xf32>
    %c0_1 = arith.constant 0 : index
    %c0_2 = arith.constant 0 : index
    %1 = vector.load %arg2[%c0_1, %c0_2] : memref<32x128xf32, #tpu.memory_space<vmem>>, vector<32x128xf32>
    %cst = arith.constant dense<0.000000e+00> : vector<8x128xf32>
    %2 = tpu.matmul %0, %1, %cst {dimension_numbers = #tpu.dot_dimension_numbers<[1], [0], [0], [1], [0, 0, 1, 1], [], []>} : vector<8x32xf32>, vector<32x128xf32>, vector<8x128xf32> -> vector<8x128xf32>
    %c0_3 = arith.constant 0 : index
    %c0_4 = arith.constant 0 : index
    %3 = vector.load %arg3[%c0_3, %c0_4] : memref<1x128xf32, #tpu.memory_space<vmem>>, vector<1x128xf32>
    %4 = vector.broadcast %3 : vector<1x128xf32> to vector<8x128xf32>
    %5 = arith.addf %2, %4 : vector<8x128xf32>
    %cst_5 = arith.constant 0.000000e+00 : f32
    %6 = vector.broadcast %cst_5 : f32 to vector<8x128xf32>
    %7 = arith.maximumf %5, %6 : vector<8x128xf32>
    %c0_6 = arith.constant 0 : index
    %c0_7 = arith.constant 0 : index
    %8 = vector.load %arg4[%c0_6, %c0_7] : memref<128x64xf32, #tpu.memory_space<vmem>>, vector<128x64xf32>
    %cst_8 = arith.constant dense<0.000000e+00> : vector<8x64xf32>
    %9 = tpu.matmul %7, %8, %cst_8 {dimension_numbers = #tpu.dot_dimension_numbers<[1], [0], [0], [1], [0, 0, 1, 1], [], []>} : vector<8x128xf32>, vector<128x64xf32>, vector<8x64xf32> -> vector<8x64xf32>
    %c0_9 = arith.constant 0 : index
    %c0_10 = arith.constant 0 : index
    %10 = vector.load %arg5[%c0_9, %c0_10] : memref<1x64xf32, #tpu.memory_space<vmem>>, vector<1x64xf32>
    %11 = vector.broadcast %10 : vector<1x64xf32> to vector<8x64xf32>
    %12 = arith.addf %9, %11 : vector<8x64xf32>
    %cst_11 = arith.constant 0.000000e+00 : f32
    %13 = vector.broadcast %cst_11 : f32 to vector<8x64xf32>
    %14 = arith.maximumf %12, %13 : vector<8x64xf32>
    %c0_12 = arith.constant 0 : index
    %c0_13 = arith.constant 0 : index
    %15 = vector.load %arg6[%c0_12, %c0_13] : memref<64x64xf32, #tpu.memory_space<vmem>>, vector<64x64xf32>
    %cst_14 = arith.constant dense<0.000000e+00> : vector<8x64xf32>
    %16 = tpu.matmul %14, %15, %cst_14 {dimension_numbers = #tpu.dot_dimension_numbers<[1], [0], [0], [1], [0, 0, 1, 1], [], []>} : vector<8x64xf32>, vector<64x64xf32>, vector<8x64xf32> -> vector<8x64xf32>
    %c0_15 = arith.constant 0 : index
    %c0_16 = arith.constant 0 : index
    %17 = vector.load %arg7[%c0_15, %c0_16] : memref<1x64xf32, #tpu.memory_space<vmem>>, vector<1x64xf32>
    %18 = vector.broadcast %17 : vector<1x64xf32> to vector<8x64xf32>
    %19 = arith.addf %16, %18 : vector<8x64xf32>
    %cst_17 = arith.constant 0.000000e+00 : f32
    %20 = vector.broadcast %cst_17 : f32 to vector<8x64xf32>
    %21 = arith.maximumf %19, %20 : vector<8x64xf32>
    %c0_18 = arith.constant 0 : index
    %c0_19 = arith.constant 0 : index
    %22 = vector.load %arg8[%c0_18, %c0_19] : memref<64x48xf32, #tpu.memory_space<vmem>>, vector<64x48xf32>
    %cst_20 = arith.constant dense<0.000000e+00> : vector<8x48xf32>
    %23 = tpu.matmul %21, %22, %cst_20 {dimension_numbers = #tpu.dot_dimension_numbers<[1], [0], [0], [1], [0, 0, 1, 1], [], []>} : vector<8x64xf32>, vector<64x48xf32>, vector<8x48xf32> -> vector<8x48xf32>
    %c0_21 = arith.constant 0 : index
    %c0_22 = arith.constant 0 : index
    %24 = vector.load %arg9[%c0_21, %c0_22] : memref<1x48xf32, #tpu.memory_space<vmem>>, vector<1x48xf32>
    %25 = vector.broadcast %24 : vector<1x48xf32> to vector<8x48xf32>
    %26 = arith.addf %23, %25 : vector<8x48xf32>
    %cst_23 = arith.constant 0.000000e+00 : f32
    %27 = vector.broadcast %cst_23 : f32 to vector<8x48xf32>
    %28 = arith.maximumf %26, %27 : vector<8x48xf32>
    %c0_24 = arith.constant 0 : index
    %c0_25 = arith.constant 0 : index
    %29 = vector.load %arg10[%c0_24, %c0_25] : memref<48x16xf32, #tpu.memory_space<vmem>>, vector<48x16xf32>
    %cst_26 = arith.constant dense<0.000000e+00> : vector<8x16xf32>
    %30 = tpu.matmul %28, %29, %cst_26 {dimension_numbers = #tpu.dot_dimension_numbers<[1], [0], [0], [1], [0, 0, 1, 1], [], []>} : vector<8x48xf32>, vector<48x16xf32>, vector<8x16xf32> -> vector<8x16xf32>
    %c0_27 = arith.constant 0 : index
    %c0_28 = arith.constant 0 : index
    %31 = vector.load %arg11[%c0_27, %c0_28] : memref<1x16xf32, #tpu.memory_space<vmem>>, vector<1x16xf32>
    %32 = vector.broadcast %31 : vector<1x16xf32> to vector<8x16xf32>
    %33 = arith.addf %30, %32 : vector<8x16xf32>
    %c0_29 = arith.constant 0 : index
    %c0_30 = arith.constant 0 : index
    %34 = vector.load %arg12[%c0_29, %c0_30] : memref<8x16xf32, #tpu.memory_space<vmem>>, vector<8x16xf32>
    tpu.vector_store %arg12[%c0_29, %c0_30], %33 {strides = array<i32>} : memref<8x16xf32, #tpu.memory_space<vmem>>, vector<8x16xf32>,
    return
  }
  func.func @transform_0(%arg0: i32) -> (i32, i32) {
    %c0_i32 = arith.constant 0 : i32
    %c0_i32_0 = arith.constant 0 : i32
    return %arg0, %c0_i32 : i32, i32
  }
  func.func @transform_1(%arg0: i32) -> (i32, i32) {
    %c0_i32 = arith.constant 0 : i32
    %c0_i32_0 = arith.constant 0 : i32
    %c0_i32_1 = arith.constant 0 : i32
    return %c0_i32, %c0_i32_0 : i32, i32
  }
  func.func @transform_2(%arg0: i32) -> (i32, i32) {
    %c0_i32 = arith.constant 0 : i32
    %c0_i32_0 = arith.constant 0 : i32
    %c0_i32_1 = arith.constant 0 : i32
    return %c0_i32, %c0_i32_0 : i32, i32
  }
  func.func @transform_3(%arg0: i32) -> (i32, i32) {
    %c0_i32 = arith.constant 0 : i32
    %c0_i32_0 = arith.constant 0 : i32
    %c0_i32_1 = arith.constant 0 : i32
    return %c0_i32, %c0_i32_0 : i32, i32
  }
  func.func @transform_4(%arg0: i32) -> (i32, i32) {
    %c0_i32 = arith.constant 0 : i32
    %c0_i32_0 = arith.constant 0 : i32
    %c0_i32_1 = arith.constant 0 : i32
    return %c0_i32, %c0_i32_0 : i32, i32
  }
  func.func @transform_5(%arg0: i32) -> (i32, i32) {
    %c0_i32 = arith.constant 0 : i32
    %c0_i32_0 = arith.constant 0 : i32
    %c0_i32_1 = arith.constant 0 : i32
    return %c0_i32, %c0_i32_0 : i32, i32
  }
  func.func @transform_6(%arg0: i32) -> (i32, i32) {
    %c0_i32 = arith.constant 0 : i32
    %c0_i32_0 = arith.constant 0 : i32
    %c0_i32_1 = arith.constant 0 : i32
    return %c0_i32, %c0_i32_0 : i32, i32
  }
  func.func @transform_7(%arg0: i32) -> (i32, i32) {
    %c0_i32 = arith.constant 0 : i32
    %c0_i32_0 = arith.constant 0 : i32
    %c0_i32_1 = arith.constant 0 : i32
    return %c0_i32, %c0_i32_0 : i32, i32
  }
  func.func @transform_8(%arg0: i32) -> (i32, i32) {
    %c0_i32 = arith.constant 0 : i32
    %c0_i32_0 = arith.constant 0 : i32
    %c0_i32_1 = arith.constant 0 : i32
    return %c0_i32, %c0_i32_0 : i32, i32
  }
  func.func @transform_9(%arg0: i32) -> (i32, i32) {
    %c0_i32 = arith.constant 0 : i32
    %c0_i32_0 = arith.constant 0 : i32
    %c0_i32_1 = arith.constant 0 : i32
    return %c0_i32, %c0_i32_0 : i32, i32
  }
  func.func @transform_10(%arg0: i32) -> (i32, i32) {
    %c0_i32 = arith.constant 0 : i32
    %c0_i32_0 = arith.constant 0 : i32
    %c0_i32_1 = arith.constant 0 : i32
    return %c0_i32, %c0_i32_0 : i32, i32
  }
  func.func @transform_11(%arg0: i32) -> (i32, i32) {
    %c0_i32 = arith.constant 0 : i32
    %c0_i32_0 = arith.constant 0 : i32
    return %arg0, %c0_i32 : i32, i32
  }
}

</mosaic_0001>

<llo_original>
// kernel: tpu_custom_call.1
$region0: #{tpu_custom_call.1}
  #allocation0 [shape = 'u32[]', space=smem, size = 0x4, offset = 0x4, fixed_abs, tag = 'smem constant byte address 0x4 - core index']
  #allocation1 [shape = 'u32[144,128]{1,0:T(1,128)}', space=vmem, size = 0x12000, scoped, tag = 'internal scratch']
  %s0 = inlined_call_operand.vmem [shape: f32[8,32], index: 0, kind: input, shape index: {}]
  %s1 = inlined_call_operand.vmem [shape: f32[32,128], index: 1, kind: input, shape index: {}]
  %s2 = inlined_call_operand.vmem [shape: f32[1,128], index: 2, kind: input, shape index: {}]
  %s3 = inlined_call_operand.vmem [shape: f32[128,64], index: 3, kind: input, shape index: {}]
  %s4 = inlined_call_operand.vmem [shape: f32[1,64], index: 4, kind: input, shape index: {}]
  %s5 = inlined_call_operand.vmem [shape: f32[64,64], index: 5, kind: input, shape index: {}]
  %s6 = inlined_call_operand.vmem [shape: f32[1,64], index: 6, kind: input, shape index: {}]
  %s7 = inlined_call_operand.vmem [shape: f32[64,48], index: 7, kind: input, shape index: {}]
  %s8 = inlined_call_operand.vmem [shape: f32[1,48], index: 8, kind: input, shape index: {}]
  %s9 = inlined_call_operand.vmem [shape: f32[48,16], index: 9, kind: input, shape index: {}]
  %s10 = inlined_call_operand.vmem [shape: f32[1,16], index: 10, kind: input, shape index: {}]
  %s11 = inlined_call_operand.hbm [shape: f32[8,16], index: 11, kind: output, shape index: {}]
  %s12 = sld [smem:[#allocation0]]
  $region54: #{tpu_custom_call.1} parent=0
    _
  %s14 = ssub.s32 1, %s12
  %s15 = scalar_select 0, %s14, %s12
  $region1: #{tpu_custom_call.1} parent=0
    #allocation2 [shape = 'u8[4096]{0}', space=vmem, size = 0x1000, scoped, tag = 'output window, operand 0, single buffered']
    #allocation3 [shape = 's32[1]{0}', space=sflag, size = 0x4, scoped, tag = 'scoped memory for tpu_custom_call.1']
    %16 = vsyncpa [#allocation3], 0
    // Predicated region
    $region2: #{tpu_custom_call.1} parent=1 // pred_check
      _
    $region3: #{tpu_custom_call.1} parent=1 // pred_check_branch
      %18 = sbr.rel (0) target = $region5
    $region4: #{tpu_custom_call.1} parent=1 // pred_region
      _
    $region5: #{tpu_custom_call.1} parent=1 // pred_fallthru
      _
    // Predicated region
    $region6: #{tpu_custom_call.1} parent=1 // pred_check
      _
    $region7: #{tpu_custom_call.1} parent=1 // pred_check_branch
      %20 = sbr.rel (0) target = $region9
    $region8: #{tpu_custom_call.1} parent=1 // pred_region
      _
    $region9: #{tpu_custom_call.1} parent=1 // pred_fallthru
      _
    // Predicated region
    $region10: #{tpu_custom_call.1} parent=1 // pred_check
      _
    $region11: #{tpu_custom_call.1} parent=1 // pred_check_branch
      %22 = sbr.rel (0) target = $region13
    $region12: #{tpu_custom_call.1} parent=1 // pred_region
      _
    $region13: #{tpu_custom_call.1} parent=1 // pred_fallthru
      _
    // Predicated region
    $region14: #{tpu_custom_call.1} parent=1 // pred_check
      _
    $region15: #{tpu_custom_call.1} parent=1 // pred_check_branch
      %24 = sbr.rel (0) target = $region17
    $region16: #{tpu_custom_call.1} parent=1 // pred_region
      _
    $region17: #{tpu_custom_call.1} parent=1 // pred_fallthru
      _
    // Predicated region
    $region18: #{tpu_custom_call.1} parent=1 // pred_check
      _
    $region19: #{tpu_custom_call.1} parent=1 // pred_check_branch
      %26 = sbr.rel (0) target = $region21
    $region20: #{tpu_custom_call.1} parent=1 // pred_region
      _
    $region21: #{tpu_custom_call.1} parent=1 // pred_fallthru
      _
    // Predicated region
    $region22: #{tpu_custom_call.1} parent=1 // pred_check
      _
    $region23: #{tpu_custom_call.1} parent=1 // pred_check_branch
      %28 = sbr.rel (0) target = $region25
    $region24: #{tpu_custom_call.1} parent=1 // pred_region
      _
    $region25: #{tpu_custom_call.1} parent=1 // pred_fallthru
      _
    // Predicated region
    $region26: #{tpu_custom_call.1} parent=1 // pred_check
      _
    $region27: #{tpu_custom_call.1} parent=1 // pred_check_branch
      %30 = sbr.rel (0) target = $region29
    $region28: #{tpu_custom_call.1} parent=1 // pred_region
      _
    $region29: #{tpu_custom_call.1} parent=1 // pred_fallthru
      _
    // Predicated region
    $region30: #{tpu_custom_call.1} parent=1 // pred_check
      _
    $region31: #{tpu_custom_call.1} parent=1 // pred_check_branch
      %32 = sbr.rel (0) target = $region33
    $region32: #{tpu_custom_call.1} parent=1 // pred_region
      _
    $region33: #{tpu_custom_call.1} parent=1 // pred_fallthru
      _
    // Predicated region
    $region34: #{tpu_custom_call.1} parent=1 // pred_check
      _
    $region35: #{tpu_custom_call.1} parent=1 // pred_check_branch
      %34 = sbr.rel (0) target = $region37
    $region36: #{tpu_custom_call.1} parent=1 // pred_region
      _
    $region37: #{tpu_custom_call.1} parent=1 // pred_fallthru
      _
    // Predicated region
    $region38: #{tpu_custom_call.1} parent=1 // pred_check
      _
    $region39: #{tpu_custom_call.1} parent=1 // pred_check_branch
      %36 = sbr.rel (0) target = $region41
    $region40: #{tpu_custom_call.1} parent=1 // pred_region
      _
    $region41: #{tpu_custom_call.1} parent=1 // pred_fallthru
      _
    // Predicated region
    $region42: #{tpu_custom_call.1} parent=1 // pred_check
      _
    $region43: #{tpu_custom_call.1} parent=1 // pred_check_branch
      %38 = sbr.rel (0) target = $region45
    $region44: #{tpu_custom_call.1} parent=1 // pred_region
      _
    $region45: #{tpu_custom_call.1} parent=1 // pred_fallthru
      _
    %v39 = vld [vmem:[%s0] sm:$0xff]
    %v40 = vld [vmem:[%s1] sm:$0xff]
    %v41 = vld [vmem:[%s1 + $0x8] sm:$0xff]
    %v42 = vld [vmem:[%s1 + $0x10] sm:$0xff]
    %v43 = vld [vmem:[%s1 + $0x18] sm:$0xff]
    %v44 = vld [vmem:[%s2] sm:$0x1]
    %v46 = vlaneseq
    %v47 = vshrl.u32 %v46, 7
    %v48 = vsub.s32 0, %v47
    %v49 = vrot.slane %v44, %v48
    %vm51 = vcmask 261120
    %v53 = vsel %vm51, %v39, 0
    %55 = vmatprep.subr.mxu0 0.0
    %56 = vmatpush1.msra.mxu0 %v40
    %57 = vmatprep.subr.mxu0 0.0
    %58 = vmatpush1.msra.mxu0 %v41
    %59 = vmatprep.subr.mxu0 0.0
    %60 = vmatpush1.msra.mxu0 %v42
    %61 = vmatprep.subr.mxu0 0.0
    %62 = vmatpush1.msra.mxu0 %v43
    %63 = vmatprep.subr.mxu0 0.0
    %64 = vmatpush1.msra.mxu0 0.0
    %65 = vmatprep.subr.mxu0 0.0
    %66 = vmatpush1.msra.mxu0 0.0
    %67 = vmatprep.subr.mxu0 0.0
    %68 = vmatpush1.msra.mxu0 0.0
    %69 = vmatprep.subr.mxu0 0.0
    %70 = vmatpush1.msra.mxu0 0.0
    %71 = vmatprep.subr.mxu0 0.0
    %72 = vmatpush1.msra.mxu0 0.0
    %73 = vmatprep.subr.mxu0 0.0
    %74 = vmatpush1.msra.mxu0 0.0
    %75 = vmatprep.subr.mxu0 0.0
    %76 = vmatpush1.msra.mxu0 0.0
    %77 = vmatprep.subr.mxu0 0.0
    %78 = vmatpush1.msra.mxu0 0.0
    %79 = vmatprep.subr.mxu0 0.0
    %80 = vmatpush1.msra.mxu0 0.0
    %81 = vmatprep.subr.mxu0 0.0
    %82 = vmatpush1.msra.mxu0 0.0
    %83 = vmatprep.subr.mxu0 0.0
    %84 = vmatpush1.msra.mxu0 0.0
    %85 = vmatprep.subr.mxu0 0.0
    %86 = vmatpush1.msra.mxu0 0.0
    %87 = vmatprep.subr.mxu0 0.0
    %88 = vmatpush1.msra.mxu0 0.0
    %89 = vmatprep.subr.mxu0 0.0
    %90 = vmatpush1.msra.mxu0 0.0
    %91 = vmatprep.subr.mxu0 0.0
    %92 = vmatpush1.msra.mxu0 0.0
    %93 = vmatprep.subr.mxu0 0.0
    %94 = vmatpush1.msra.mxu0 0.0
    %95 = vmatprep.subr.mxu0 0.0
    %96 = vmatpush1.msra.mxu0 0.0
    %97 = vmatprep.subr.mxu0 0.0
    %98 = vmatpush1.msra.mxu0 0.0
    %99 = vmatprep.subr.mxu0 0.0
    %100 = vmatpush1.msra.mxu0 0.0
    %101 = vmatprep.subr.mxu0 0.0
    %102 = vmatpush1.msra.mxu0 0.0
    %103 = vmatprep.subr.mxu0 0.0
    %104 = vmatpush1.msra.mxu0 0.0
    %105 = vmatprep.subr.mxu0 0.0
    %106 = vmatpush1.msra.mxu0 0.0
    %107 = vmatprep.subr.mxu0 0.0
    %108 = vmatpush1.msra.mxu0 0.0
    %109 = vmatprep.subr.mxu0 0.0
    %110 = vmatpush1.msra.mxu0 0.0
    %111 = vmatprep.subr.mxu0 0.0
    %112 = vmatpush1.msra.mxu0 0.0
    %113 = vmatprep.subr.mxu0 0.0
    %114 = vmatpush1.msra.mxu0 0.0
    %115 = vmatprep.subr.mxu0 0.0
    %116 = vmatpush1.msra.mxu0 0.0
    %117 = vmatprep.subr.mxu0 0.0
    %118 = vmatpush1.msra.mxu0 0.0
    %119 = vmatprep.mubr.f32.mxu0 0.0
    %120 = vmatmul.mubr.f32.gmra.mrb[0].mxu0 %v53
    %v121 = vpop.f32.mrb[0].mxu0
    %v122 = vadd.f32 %v49, %v121
    %v123 = vpop.f32.mrb[0].mxu0
    %124 = vdwg.mxu0
    %v125 = vmax.f32 %v122, 0.0
    %v126 = vld [vmem:[%s3] sm:$0xff]
    %v127 = vld [vmem:[%s3 + $0x8] sm:$0xff]
    %v128 = vld [vmem:[%s3 + $0x10] sm:$0xff]
    %v129 = vld [vmem:[%s3 + $0x18] sm:$0xff]
    %v130 = vld [vmem:[%s3 + $0x20] sm:$0xff]
    %v131 = vld [vmem:[%s3 + $0x28] sm:$0xff]
    %v132 = vld [vmem:[%s3 + $0x30] sm:$0xff]
    %v133 = vld [vmem:[%s3 + $0x38] sm:$0xff]
    %v134 = vld [vmem:[%s3 + $0x40] sm:$0xff]
    %v135 = vld [vmem:[%s3 + $0x48] sm:$0xff]
    %v136 = vld [vmem:[%s3 + $0x50] sm:$0xff]
    %v137 = vld [vmem:[%s3 + $0x58] sm:$0xff]
    %v138 = vld [vmem:[%s3 + $0x60] sm:$0xff]
    %v139 = vld [vmem:[%s3 + $0x68] sm:$0xff]
    %v140 = vld [vmem:[%s3 + $0x70] sm:$0xff]
    %v141 = vld [vmem:[%s3 + $0x78] sm:$0xff]
    %v142 = vld [vmem:[%s4] sm:$0x1]
    %v144 = vlaneseq
    %v145 = vshrl.u32 %v144, 7
    %v146 = vsub.s32 0, %v145
    %v147 = vrot.slane %v142, %v146
    %149 = vmatprep.subr.mxu0 0.0
    %150 = vmatpush1.msra.mxu0 %v126
    %151 = vmatprep.subr.mxu0 0.0
    %152 = vmatpush1.msra.mxu0 %v127
    %153 = vmatprep.subr.mxu0 0.0
    %154 = vmatpush1.msra.mxu0 %v128
    %155 = vmatprep.subr.mxu0 0.0
    %156 = vmatpush1.msra.mxu0 %v129
    %157 = vmatprep.subr.mxu0 0.0
    %158 = vmatpush1.msra.mxu0 %v130
    %159 = vmatprep.subr.mxu0 0.0
    %160 = vmatpush1.msra.mxu0 %v131
    %161 = vmatprep.subr.mxu0 0.0
    %162 = vmatpush1.msra.mxu0 %v132
    %163 = vmatprep.subr.mxu0 0.0
    %164 = vmatpush1.msra.mxu0 %v133
    %165 = vmatprep.subr.mxu0 0.0
    %166 = vmatpush1.msra.mxu0 %v134
    %167 = vmatprep.subr.mxu0 0.0
    %168 = vmatpush1.msra.mxu0 %v135
    %169 = vmatprep.subr.mxu0 0.0
    %170 = vmatpush1.msra.mxu0 %v136
    %171 = vmatprep.subr.mxu0 0.0
    %172 = vmatpush1.msra.mxu0 %v137
    %173 = vmatprep.subr.mxu0 0.0
    %174 = vmatpush1.msra.mxu0 %v138
    %175 = vmatprep.subr.mxu0 0.0
    %176 = vmatpush1.msra.mxu0 %v139
    %177 = vmatprep.subr.mxu0 0.0
    %178 = vmatpush1.msra.mxu0 %v140
    %179 = vmatprep.subr.mxu0 0.0
    %180 = vmatpush1.msra.mxu0 %v141
    %181 = vmatprep.subr.mxu0 0.0
    %182 = vmatpush1.msra.mxu0 0.0
    %183 = vmatprep.subr.mxu0 0.0
    %184 = vmatpush1.msra.mxu0 0.0
    %185 = vmatprep.subr.mxu0 0.0
    %186 = vmatpush1.msra.mxu0 0.0
    %187 = vmatprep.subr.mxu0 0.0
    %188 = vmatpush1.msra.mxu0 0.0
    %189 = vmatprep.subr.mxu0 0.0
    %190 = vmatpush1.msra.mxu0 0.0
    %191 = vmatprep.subr.mxu0 0.0
    %192 = vmatpush1.msra.mxu0 0.0
    %193 = vmatprep.subr.mxu0 0.0
    %194 = vmatpush1.msra.mxu0 0.0
    %195 = vmatprep.subr.mxu0 0.0
    %196 = vmatpush1.msra.mxu0 0.0
    %197 = vmatprep.subr.mxu0 0.0
    %198 = vmatpush1.msra.mxu0 0.0
    %199 = vmatprep.subr.mxu0 0.0
    %200 = vmatpush1.msra.mxu0 0.0
    %201 = vmatprep.subr.mxu0 0.0
    %202 = vmatpush1.msra.mxu0 0.0
    %203 = vmatprep.subr.mxu0 0.0
    %204 = vmatpush1.msra.mxu0 0.0
    %205 = vmatprep.subr.mxu0 0.0
    %206 = vmatpush1.msra.mxu0 0.0
    %207 = vmatprep.subr.mxu0 0.0
    %208 = vmatpush1.msra.mxu0 0.0
    %209 = vmatprep.subr.mxu0 0.0
    %210 = vmatpush1.msra.mxu0 0.0
    %211 = vmatprep.subr.mxu0 0.0
    %212 = vmatpush1.msra.mxu0 0.0
    %213 = vmatprep.mubr.f32.mxu0 0.0
    %214 = vmatmul.mubr.f32.gmra.mrb[0].mxu0 %v125
    %v215 = vpop.f32.mrb[0].mxu0
    %v216 = vadd.f32 %v147, %v215
    %v217 = vpop.f32.mrb[0].mxu0
    %218 = vdwg.mxu0
    %v219 = vmax.f32 %v216, 0.0
    %v220 = vld [vmem:[%s5] sm:$0xff]
    %v221 = vld [vmem:[%s5 + $0x8] sm:$0xff]
    %v222 = vld [vmem:[%s5 + $0x10] sm:$0xff]
    %v223 = vld [vmem:[%s5 + $0x18] sm:$0xff]
    %v224 = vld [vmem:[%s5 + $0x20] sm:$0xff]
    %v225 = vld [vmem:[%s5 + $0x28] sm:$0xff]
    %v226 = vld [vmem:[%s5 + $0x30] sm:$0xff]
    %v227 = vld [vmem:[%s5 + $0x38] sm:$0xff]
    %v228 = vld [vmem:[%s6] sm:$0x1]
    %v230 = vlaneseq
    %v231 = vshrl.u32 %v230, 7
    %v232 = vsub.s32 0, %v231
    %v233 = vrot.slane %v228, %v232
    %vm235 = vcmask 523264
    %v237 = vsel %vm235, %v219, 0
    %239 = vmatprep.subr.mxu0 0.0
    %240 = vmatpush1.msra.mxu0 %v220
    %241 = vmatprep.subr.mxu0 0.0
    %242 = vmatpush1.msra.mxu0 %v221
    %243 = vmatprep.subr.mxu0 0.0
    %244 = vmatpush1.msra.mxu0 %v222
    %245 = vmatprep.subr.mxu0 0.0
    %246 = vmatpush1.msra.mxu0 %v223
    %247 = vmatprep.subr.mxu0 0.0
    %248 = vmatpush1.msra.mxu0 %v224
    %249 = vmatprep.subr.mxu0 0.0
    %250 = vmatpush1.msra.mxu0 %v225
    %251 = vmatprep.subr.mxu0 0.0
    %252 = vmatpush1.msra.mxu0 %v226
    %253 = vmatprep.subr.mxu0 0.0
    %254 = vmatpush1.msra.mxu0 %v227
    %255 = vmatprep.subr.mxu0 0.0
    %256 = vmatpush1.msra.mxu0 0.0
    %257 = vmatprep.subr.mxu0 0.0
    %258 = vmatpush1.msra.mxu0 0.0
    %259 = vmatprep.subr.mxu0 0.0
    %260 = vmatpush1.msra.mxu0 0.0
    %261 = vmatprep.subr.mxu0 0.0
    %262 = vmatpush1.msra.mxu0 0.0
    %263 = vmatprep.subr.mxu0 0.0
    %264 = vmatpush1.msra.mxu0 0.0
    %265 = vmatprep.subr.mxu0 0.0
    %266 = vmatpush1.msra.mxu0 0.0
    %267 = vmatprep.subr.mxu0 0.0
    %268 = vmatpush1.msra.mxu0 0.0
    %269 = vmatprep.subr.mxu0 0.0
    %270 = vmatpush1.msra.mxu0 0.0
    %271 = vmatprep.subr.mxu0 0.0
    %272 = vmatpush1.msra.mxu0 0.0
    %273 = vmatprep.subr.mxu0 0.0
    %274 = vmatpush1.msra.mxu0 0.0
    %275 = vmatprep.subr.mxu0 0.0
    %276 = vmatpush1.msra.mxu0 0.0
    %277 = vmatprep.subr.mxu0 0.0
    %278 = vmatpush1.msra.mxu0 0.0
    %279 = vmatprep.subr.mxu0 0.0
    %280 = vmatpush1.msra.mxu0 0.0
    %281 = vmatprep.subr.mxu0 0.0
    %282 = vmatpush1.msra.mxu0 0.0
    %283 = vmatprep.subr.mxu0 0.0
    %284 = vmatpush1.msra.mxu0 0.0
    %285 = vmatprep.subr.mxu0 0.0
    %286 = vmatpush1.msra.mxu0 0.0
    %287 = vmatprep.subr.mxu0 0.0
    %288 = vmatpush1.msra.mxu0 0.0
    %289 = vmatprep.subr.mxu0 0.0
    %290 = vmatpush1.msra.mxu0 0.0
    %291 = vmatprep.subr.mxu0 0.0
    %292 = vmatpush1.msra.mxu0 0.0
    %293 = vmatprep.subr.mxu0 0.0
    %294 = vmatpush1.msra.mxu0 0.0
    %295 = vmatprep.subr.mxu0 0.0
    %296 = vmatpush1.msra.mxu0 0.0
    %297 = vmatprep.subr.mxu0 0.0
    %298 = vmatpush1.msra.mxu0 0.0
    %299 = vmatprep.subr.mxu0 0.0
    %300 = vmatpush1.msra.mxu0 0.0
    %301 = vmatprep.subr.mxu0 0.0
    %302 = vmatpush1.msra.mxu0 0.0
    %303 = vmatprep.mubr.f32.mxu0 0.0
    %304 = vmatmul.mubr.f32.gmra.mrb[0].mxu0 %v237
    %v305 = vpop.f32.mrb[0].mxu0
    %v306 = vadd.f32 %v233, %v305
    %v307 = vpop.f32.mrb[0].mxu0
    %308 = vdwg.mxu0
    %v309 = vmax.f32 %v306, 0.0
    %v310 = vld [vmem:[%s7] sm:$0xff]
    %v311 = vld [vmem:[%s7 + $0x8] sm:$0xff]
    %v312 = vld [vmem:[%s7 + $0x10] sm:$0xff]
    %v313 = vld [vmem:[%s7 + $0x18] sm:$0xff]
    %v314 = vld [vmem:[%s7 + $0x20] sm:$0xff]
    %v315 = vld [vmem:[%s7 + $0x28] sm:$0xff]
    %v316 = vld [vmem:[%s7 + $0x30] sm:$0xff]
    %v317 = vld [vmem:[%s7 + $0x38] sm:$0xff]
    %v318 = vld [vmem:[%s8] sm:$0x1]
    %v320 = vlaneseq
    %v321 = vshrl.u32 %v320, 7
    %v322 = vsub.s32 0, %v321
    %v323 = vrot.slane %v318, %v322
    %v326 = vsel %vm235, %v309, 0
    %328 = vmatprep.subr.mxu0 0.0
    %329 = vmatpush1.msra.mxu0 %v310
    %330 = vmatprep.subr.mxu0 0.0
    %331 = vmatpush1.msra.mxu0 %v311
    %332 = vmatprep.subr.mxu0 0.0
    %333 = vmatpush1.msra.mxu0 %v312
    %334 = vmatprep.subr.mxu0 0.0
    %335 = vmatpush1.msra.mxu0 %v313
    %336 = vmatprep.subr.mxu0 0.0
    %337 = vmatpush1.msra.mxu0 %v314
    %338 = vmatprep.subr.mxu0 0.0
    %339 = vmatpush1.msra.mxu0 %v315
    %340 = vmatprep.subr.mxu0 0.0
    %341 = vmatpush1.msra.mxu0 %v316
    %342 = vmatprep.subr.mxu0 0.0
    %343 = vmatpush1.msra.mxu0 %v317
    %344 = vmatprep.subr.mxu0 0.0
    %345 = vmatpush1.msra.mxu0 0.0
    %346 = vmatprep.subr.mxu0 0.0
    %347 = vmatpush1.msra.mxu0 0.0
    %348 = vmatprep.subr.mxu0 0.0
    %349 = vmatpush1.msra.mxu0 0.0
    %350 = vmatprep.subr.mxu0 0.0
    %351 = vmatpush1.msra.mxu0 0.0
    %352 = vmatprep.subr.mxu0 0.0
    %353 = vmatpush1.msra.mxu0 0.0
    %354 = vmatprep.subr.mxu0 0.0
    %355 = vmatpush1.msra.mxu0 0.0
    %356 = vmatprep.subr.mxu0 0.0
    %357 = vmatpush1.msra.mxu0 0.0
    %358 = vmatprep.subr.mxu0 0.0
    %359 = vmatpush1.msra.mxu0 0.0
    %360 = vmatprep.subr.mxu0 0.0
    %361 = vmatpush1.msra.mxu0 0.0
    %362 = vmatprep.subr.mxu0 0.0
    %363 = vmatpush1.msra.mxu0 0.0
    %364 = vmatprep.subr.mxu0 0.0
    %365 = vmatpush1.msra.mxu0 0.0
    %366 = vmatprep.subr.mxu0 0.0
    %367 = vmatpush1.msra.mxu0 0.0
    %368 = vmatprep.subr.mxu0 0.0
    %369 = vmatpush1.msra.mxu0 0.0
    %370 = vmatprep.subr.mxu0 0.0
    %371 = vmatpush1.msra.mxu0 0.0
    %372 = vmatprep.subr.mxu0 0.0
    %373 = vmatpush1.msra.mxu0 0.0
    %374 = vmatprep.subr.mxu0 0.0
    %375 = vmatpush1.msra.mxu0 0.0
    %376 = vmatprep.subr.mxu0 0.0
    %377 = vmatpush1.msra.mxu0 0.0
    %378 = vmatprep.subr.mxu0 0.0
    %379 = vmatpush1.msra.mxu0 0.0
    %380 = vmatprep.subr.mxu0 0.0
    %381 = vmatpush1.msra.mxu0 0.0
    %382 = vmatprep.subr.mxu0 0.0
    %383 = vmatpush1.msra.mxu0 0.0
    %384 = vmatprep.subr.mxu0 0.0
    %385 = vmatpush1.msra.mxu0 0.0
    %386 = vmatprep.subr.mxu0 0.0
    %387 = vmatpush1.msra.mxu0 0.0
    %388 = vmatprep.subr.mxu0 0.0
    %389 = vmatpush1.msra.mxu0 0.0
    %390 = vmatprep.subr.mxu0 0.0
    %391 = vmatpush1.msra.mxu0 0.0
    %392 = vmatprep.mubr.f32.mxu0 0.0
    %393 = vmatmul.mubr.f32.gmra.mrb[0].mxu0 %v326
    %v394 = vpop.f32.mrb[0].mxu0
    %v395 = vadd.f32 %v323, %v394
    %v396 = vpop.f32.mrb[0].mxu0
    %397 = vdwg.mxu0
    %v398 = vmax.f32 %v395, 0.0
    %v399 = vld [vmem:[%s9] sm:$0xff]
    %v400 = vld [vmem:[%s9 + $0x8] sm:$0xff]
    %v401 = vld [vmem:[%s9 + $0x10] sm:$0xff]
    %v402 = vld [vmem:[%s9 + $0x18] sm:$0xff]
    %v403 = vld [vmem:[%s9 + $0x20] sm:$0xff]
    %v404 = vld [vmem:[%s9 + $0x28] sm:$0xff]
    %v405 = vld [vmem:[%s10] sm:$0x1]
    %v407 = vlaneseq
    %v408 = vshrl.u32 %v407, 7
    %v409 = vsub.s32 0, %v408
    %v410 = vrot.slane %v405, %v409
    %vm412 = vcmask 392192
    %v414 = vsel %vm412, %v398, 0
    %416 = vmatprep.subr.mxu0 0.0
    %417 = vmatpush1.msra.mxu0 %v399
    %418 = vmatprep.subr.mxu0 0.0
    %419 = vmatpush1.msra.mxu0 %v400
    %420 = vmatprep.subr.mxu0 0.0
    %421 = vmatpush1.msra.mxu0 %v401
    %422 = vmatprep.subr.mxu0 0.0
    %423 = vmatpush1.msra.mxu0 %v402
    %424 = vmatprep.subr.mxu0 0.0
    %425 = vmatpush1.msra.mxu0 %v403
    %426 = vmatprep.subr.mxu0 0.0
    %427 = vmatpush1.msra.mxu0 %v404
    %428 = vmatprep.subr.mxu0 0.0
    %429 = vmatpush1.msra.mxu0 0.0
    %430 = vmatprep.subr.mxu0 0.0
    %431 = vmatpush1.msra.mxu0 0.0
    %432 = vmatprep.subr.mxu0 0.0
    %433 = vmatpush1.msra.mxu0 0.0
    %434 = vmatprep.subr.mxu0 0.0
    %435 = vmatpush1.msra.mxu0 0.0
    %436 = vmatprep.subr.mxu0 0.0
    %437 = vmatpush1.msra.mxu0 0.0
    %438 = vmatprep.subr.mxu0 0.0
    %439 = vmatpush1.msra.mxu0 0.0
    %440 = vmatprep.subr.mxu0 0.0
    %441 = vmatpush1.msra.mxu0 0.0
    %442 = vmatprep.subr.mxu0 0.0
    %443 = vmatpush1.msra.mxu0 0.0
    %444 = vmatprep.subr.mxu0 0.0
    %445 = vmatpush1.msra.mxu0 0.0
    %446 = vmatprep.subr.mxu0 0.0
    %447 = vmatpush1.msra.mxu0 0.0
    %448 = vmatprep.subr.mxu0 0.0
    %449 = vmatpush1.msra.mxu0 0.0
    %450 = vmatprep.subr.mxu0 0.0
    %451 = vmatpush1.msra.mxu0 0.0
    %452 = vmatprep.subr.mxu0 0.0
    %453 = vmatpush1.msra.mxu0 0.0
    %454 = vmatprep.subr.mxu0 0.0
    %455 = vmatpush1.msra.mxu0 0.0
    %456 = vmatprep.subr.mxu0 0.0
    %457 = vmatpush1.msra.mxu0 0.0
    %458 = vmatprep.subr.mxu0 0.0
    %459 = vmatpush1.msra.mxu0 0.0
    %460 = vmatprep.subr.mxu0 0.0
    %461 = vmatpush1.msra.mxu0 0.0
    %462 = vmatprep.subr.mxu0 0.0
    %463 = vmatpush1.msra.mxu0 0.0
    %464 = vmatprep.subr.mxu0 0.0
    %465 = vmatpush1.msra.mxu0 0.0
    %466 = vmatprep.subr.mxu0 0.0
    %467 = vmatpush1.msra.mxu0 0.0
    %468 = vmatprep.subr.mxu0 0.0
    %469 = vmatpush1.msra.mxu0 0.0
    %470 = vmatprep.subr.mxu0 0.0
    %471 = vmatpush1.msra.mxu0 0.0
    %472 = vmatprep.subr.mxu0 0.0
    %473 = vmatpush1.msra.mxu0 0.0
    %474 = vmatprep.subr.mxu0 0.0
    %475 = vmatpush1.msra.mxu0 0.0
    %476 = vmatprep.subr.mxu0 0.0
    %477 = vmatpush1.msra.mxu0 0.0
    %478 = vmatprep.subr.mxu0 0.0
    %479 = vmatpush1.msra.mxu0 0.0
    %480 = vmatprep.mubr.f32.mxu0 0.0
    %481 = vmatmul.mubr.f32.gmra.mrb[0].mxu0 %v414
    %v482 = vpop.f32.mrb[0].mxu0
    %v483 = vadd.f32 %v410, %v482
    %v484 = vpop.f32.mrb[0].mxu0
    %485 = vdwg.mxu0
    %vm486 = vcmask 130048
    %487 = vst.msk [vmem:[#allocation2] sm:$0xff] %vm486, %v483
    // Predicated region
    $region46: #{tpu_custom_call.1} parent=1 // pred_check
      _
    $region47: #{tpu_custom_call.1} parent=1 // pred_check_branch
      %489 = sbr.rel (0) target = $region49
    $region48: #{tpu_custom_call.1} parent=1 // pred_region
      %s491 = ssub.s32 128, 128
      %492 = vsyncadd [#allocation3], %s491
      %s494 = sshll.u32 [#allocation2], 4
      %s495 = int_to_ptr.vmem [resolvable:$true] %s494
      %497 = dma.vmem_to_hbm [thread:$0]  %s495, 128, %s11, [#allocation3]
    $region49: #{tpu_custom_call.1} parent=1 // pred_fallthru
      _
    // Predicated region
    $region50: #{tpu_custom_call.1} parent=1 // pred_check
      _
    $region51: #{tpu_custom_call.1} parent=1 // pred_check_branch
      %499 = sbr.rel (0) target = $region53
    $region52: #{tpu_custom_call.1} parent=1 // pred_region
      %500 = dma.done [#allocation3], 128
    $region53: #{tpu_custom_call.1} parent=1 // pred_fallthru
      _
    %501 = vsyncpa [#allocation3], 1

</llo_original>
